<compile_context>
chip_gen: v5e
topology: v5e:2x2
jax: 0.10.0
libtpu: 0.0.40
codegen_flags: <defaults>
</compile_context>

<pallas_src>
import functools

import jax
import jax.numpy as jnp
from jax.experimental import pallas as pl
from jax.experimental.pallas import tpu as pltpu


# -----------------------------------------------------------------------------
# Pallas kernel: 6 matmuls on 2-D operands, everything resident in VMEM.
# -----------------------------------------------------------------------------
def cnn_decoder_kernel(enc_ref, w_ref, b_ref, out_ref, *, layer_dims):
    """layer_dims: tuple of (rows, cols, apply_relu) per packed layer."""
    x = enc_ref[...]                                        # (B, E)
    for i, (rows, cols, relu) in enumerate(layer_dims):
        w = w_ref[i, :rows, :cols]                          # static slice of pack
        b = b_ref[i:i + 1, :cols]                           # (1, cols)
        x = jnp.dot(x, w, preferred_element_type=jnp.float32) + b
        if relu:
            x = jnp.maximum(x, 0.0)
    out_ref[...] = x                                        # (B, L*A), lane-dense


# -----------------------------------------------------------------------------
# Wrapper
# -----------------------------------------------------------------------------
def cnn_decoder_forward(enc, w_all, b_all, layer_dims, *, L, A):
    B = enc.shape[0]
    kern = functools.partial(cnn_decoder_kernel, layer_dims=layer_dims)
    vmem = pl.BlockSpec(memory_space=pltpu.MemorySpace.VMEM)
    out = pl.pallas_call(
        kern,
        out_shape=jax.ShapeDtypeStruct((B, L * A), jnp.float32),
        in_specs=[vmem, vmem, vmem],
        out_specs=vmem,
    )(enc, w_all, b_all)
    return out.reshape(B, L, A)                             # free reshape in XLA


# -----------------------------------------------------------------------------
# Synthetic parameters in **PyTorch** layouts.
# -----------------------------------------------------------------------------
def init_pt_params(key, *, E, L, C, A, layers=3, K=3):
    flat = C * L
    ks = jax.random.split(key, 8)

    def u(k, shape, fan_in):
        bound = 1.0 / (fan_in ** 0.5)
        return jax.random.uniform(k, shape, minval=-bound, maxval=bound,
                                  dtype=jnp.float32)

    return {
        # de_readout MLP (readout_layers=2): Linear(E,E) -> ReLU -> Linear(E, C*L)
        "lin1_w": u(ks[0], (E, E), E),          # (out, in)
        "lin1_b": u(ks[1], (E,), E),
        "lin2_w": u(ks[2], (flat, E), E),       # (out, in); out index = c*L + l
        "lin2_b": u(ks[3], (flat,), E),
        # de_conv: ConvTranspose1d weights (in_channels, out_channels, K)
        "conv_w": u(ks[4], (layers, C, C, K), C * K),
        "conv_b": u(ks[5], (layers, C), C * K),
        # de_embedding: Linear(C, alphabet_size+1)
        "emb_w": u(ks[6], (A, C), C),           # (out, in)
        "emb_b": u(ks[7], (A,), C),
    }
    # NOTE: dropout=0.0 in the MLP readout is an inference no-op and is omitted.


# -----------------------------------------------------------------------------
# Host-side conversion: PyTorch layouts -> packed kernel matrices.
# Kernel activation layout is channels-last flat: index = l*C + c.
# -----------------------------------------------------------------------------
def _conv_band_matrix(w, L):
    """Dense (L*Cin, L*Cout) matrix for ConvTranspose1d(K, stride=1, pad=K//2).

    y[b, co, t_out] = bias[co] + sum_{k, ci, t_in=t_out+pad-k valid}
                      x[b, ci, t_in] * w[ci, co, k]
    with channels-last flat indexing (t*C + c) on both sides.
    """
    C_in, C_out, K = w.shape
    pad = K // 2
    M = jnp.zeros((L * C_in, L * C_out), jnp.float32)
    for k in range(K):
        for t_out in range(L):
            t_in = t_out + pad - k
            if 0 <= t_in < L:
                M = M.at[t_in * C_in:(t_in + 1) * C_in,
                         t_out * C_out:(t_out + 1) * C_out].set(w[:, :, k])
    return M


def pack_params(pt, *, E, L, C, A, layers=3, K=3):
    LC, LA = L * C, L * A
    mats, biases, relus = [], [], []

    # MLP layer 1: Linear(E,E) + ReLU
    mats.append(pt["lin1_w"].T)                                   # (E, E)
    biases.append(pt["lin1_b"])
    relus.append(True)

    # MLP layer 2: Linear(E, C*L); PyTorch flat ordering is c*L + l (because the
    # module reshapes to (B, C, L)); permute to kernel ordering l*C + c.
    w2 = pt["lin2_w"].T.reshape(E, C, L).transpose(0, 2, 1).reshape(E, LC)
    b2 = pt["lin2_b"].reshape(C, L).T.reshape(LC)
    mats.append(w2)
    biases.append(b2)
    relus.append(False)

    # ConvTranspose1d layers -> block-banded (LC, LC) matrices (+ ReLU)
    for l in range(layers):
        mats.append(_conv_band_matrix(pt["conv_w"][l], L))        # (LC, LC)
        biases.append(jnp.tile(pt["conv_b"][l], L))               # (LC,)
        relus.append(True)

    # de_embedding -> block-diagonal (LC, LA) matrix
    mats.append(jnp.kron(jnp.eye(L, dtype=jnp.float32), pt["emb_w"].T))
    biases.append(jnp.tile(pt["emb_b"], L))                       # (LA,)
    relus.append(False)

    rmax = max(m.shape[0] for m in mats)
    cmax = max(m.shape[1] for m in mats)
    w_all = jnp.stack([jnp.pad(m, ((0, rmax - m.shape[0]),
                                   (0, cmax - m.shape[1]))) for m in mats])
    b_all = jnp.stack([jnp.pad(b, (0, cmax - b.shape[0])) for b in biases])
    layer_dims = tuple((m.shape[0], m.shape[1], r) for m, r in zip(mats, relus))
    return w_all, b_all, layer_dims


# -----------------------------------------------------------------------------
# Pure-JAX reference following the PyTorch module's dataflow (independent
# formulation: NCW layout, conv-transpose computed by its scatter definition).
# -----------------------------------------------------------------------------
def reference_forward(enc, pt, *, L, C, A, layers=3, K=3):
    B = enc.shape[0]
    h = jnp.maximum(enc @ pt["lin1_w"].T + pt["lin1_b"], 0.0)
    flat = h @ pt["lin2_w"].T + pt["lin2_b"]                      # (B, C*L)
    x = flat.reshape(B, C, L)                                     # NCW
    pad = K // 2
    for l in range(layers):
        w, b = pt["conv_w"][l], pt["conv_b"][l]
        y = jnp.zeros((B, C, L), jnp.float32)
        for k in range(K):                # ConvTranspose1d scatter definition
            for t_in in range(L):
                t_out = t_in + k - pad
                if 0 <= t_out < L:
                    y = y.at[:, :, t_out].add(
                        jnp.einsum("bi,io->bo", x[:, :, t_in], w[:, :, k]))
        x = jnp.maximum(y + b[None, :, None], 0.0)                # ReLU
    x = x.transpose(0, 2, 1)                                      # (B, L, C)
    return x @ pt["emb_w"].T + pt["emb_b"]                        # (B, L, A)


# -----------------------------------------------------------------------------
if __name__ == "__main__":
    # Module hyperparameters: len_sequence=8, embedding_size=32, channels=4,
    # alphabet_size=4 (-> 5 output classes), layers=3, kernel_size=3.
    B, E, L, C, A_OUT = 2, 32, 8, 4, 5
    LAYERS, K = 3, 3

    key = jax.random.PRNGKey(0)
    k_enc, k_par = jax.random.split(key)
    enc = jax.random.normal(k_enc, (B, E), dtype=jnp.float32)
    pt_params = init_pt_params(k_par, E=E, L=L, C=C, A=A_OUT, layers=LAYERS, K=K)

    w_all, b_all, layer_dims = pack_params(pt_params, E=E, L=L, C=C, A=A_OUT,
                                           layers=LAYERS, K=K)

    out = cnn_decoder_forward(enc, w_all, b_all, layer_dims, L=L, A=A_OUT)
    out = jax.block_until_ready(out)

    ref = reference_forward(enc, pt_params, L=L, C=C, A=A_OUT, layers=LAYERS, K=K)
    assert out.shape == (B, L, A_OUT), out.shape
    assert jnp.allclose(out, ref, atol=1e-4, rtol=1e-4), "mismatch vs reference"

    print("KERNEL_OK")
</pallas_src>

<mosaic_0001>
module attributes {stable_mosaic.version = 11 : i64} {
  func.func @cnn_decoder_kernel(%arg0: memref<2x32xf32, #tpu.memory_space<vmem>>, %arg1: memref<6x32x40xf32, #tpu.memory_space<vmem>>, %arg2: memref<6x40xf32, #tpu.memory_space<vmem>>, %arg3: memref<2x40xf32, #tpu.memory_space<vmem>>) attributes {dimension_semantics = [], scalar_prefetch = 0 : i64, scratch_operands = 0 : i64, tpu.core_type = #tpu.core_type<tc>} {
    %c0 = arith.constant 0 : index
    %c0_0 = arith.constant 0 : index
    %0 = vector.load %arg0[%c0, %c0_0] : memref<2x32xf32, #tpu.memory_space<vmem>>, vector<2x32xf32>
    %c0_1 = arith.constant 0 : index
    %c0_2 = arith.constant 0 : index
    %c0_3 = arith.constant 0 : index
    %1 = vector.load %arg1[%c0_1, %c0_2, %c0_3] : memref<6x32x40xf32, #tpu.memory_space<vmem>>, vector<1x32x32xf32>
    %2 = vector.shape_cast %1 : vector<1x32x32xf32> to vector<32x32xf32>
    %c0_4 = arith.constant 0 : index
    %c0_5 = arith.constant 0 : index
    %3 = vector.load %arg2[%c0_4, %c0_5] : memref<6x40xf32, #tpu.memory_space<vmem>>, vector<1x32xf32>
    %cst = arith.constant dense<0.000000e+00> : vector<2x32xf32>
    %4 = tpu.matmul %0, %2, %cst {dimension_numbers = #tpu.dot_dimension_numbers<[1], [0], [0], [1], [0, 0, 1, 1], [], []>} : vector<2x32xf32>, vector<32x32xf32>, vector<2x32xf32> -> vector<2x32xf32>
    %5 = vector.broadcast %3 : vector<1x32xf32> to vector<2x32xf32>
    %6 = arith.addf %4, %5 : vector<2x32xf32>
    %cst_6 = arith.constant 0.000000e+00 : f32
    %7 = vector.broadcast %cst_6 : f32 to vector<2x32xf32>
    %8 = arith.maximumf %6, %7 : vector<2x32xf32>
    %c1 = arith.constant 1 : index
    %c0_7 = arith.constant 0 : index
    %c0_8 = arith.constant 0 : index
    %9 = vector.load %arg1[%c1, %c0_7, %c0_8] : memref<6x32x40xf32, #tpu.memory_space<vmem>>, vector<1x32x32xf32>
    %10 = vector.shape_cast %9 : vector<1x32x32xf32> to vector<32x32xf32>
    %c1_9 = arith.constant 1 : index
    %c0_10 = arith.constant 0 : index
    %11 = vector.load %arg2[%c1_9, %c0_10] : memref<6x40xf32, #tpu.memory_space<vmem>>, vector<1x32xf32>
    %cst_11 = arith.constant dense<0.000000e+00> : vector<2x32xf32>
    %12 = tpu.matmul %8, %10, %cst_11 {dimension_numbers = #tpu.dot_dimension_numbers<[1], [0], [0], [1], [0, 0, 1, 1], [], []>} : vector<2x32xf32>, vector<32x32xf32>, vector<2x32xf32> -> vector<2x32xf32>
    %13 = vector.broadcast %11 : vector<1x32xf32> to vector<2x32xf32>
    %14 = arith.addf %12, %13 : vector<2x32xf32>
    %c2 = arith.constant 2 : index
    %c0_12 = arith.constant 0 : index
    %c0_13 = arith.constant 0 : index
    %15 = vector.load %arg1[%c2, %c0_12, %c0_13] : memref<6x32x40xf32, #tpu.memory_space<vmem>>, vector<1x32x32xf32>
    %16 = vector.shape_cast %15 : vector<1x32x32xf32> to vector<32x32xf32>
    %c2_14 = arith.constant 2 : index
    %c0_15 = arith.constant 0 : index
    %17 = vector.load %arg2[%c2_14, %c0_15] : memref<6x40xf32, #tpu.memory_space<vmem>>, vector<1x32xf32>
    %cst_16 = arith.constant dense<0.000000e+00> : vector<2x32xf32>
    %18 = tpu.matmul %14, %16, %cst_16 {dimension_numbers = #tpu.dot_dimension_numbers<[1], [0], [0], [1], [0, 0, 1, 1], [], []>} : vector<2x32xf32>, vector<32x32xf32>, vector<2x32xf32> -> vector<2x32xf32>
    %19 = vector.broadcast %17 : vector<1x32xf32> to vector<2x32xf32>
    %20 = arith.addf %18, %19 : vector<2x32xf32>
    %cst_17 = arith.constant 0.000000e+00 : f32
    %21 = vector.broadcast %cst_17 : f32 to vector<2x32xf32>
    %22 = arith.maximumf %20, %21 : vector<2x32xf32>
    %c3 = arith.constant 3 : index
    %c0_18 = arith.constant 0 : index
    %c0_19 = arith.constant 0 : index
    %23 = vector.load %arg1[%c3, %c0_18, %c0_19] : memref<6x32x40xf32, #tpu.memory_space<vmem>>, vector<1x32x32xf32>
    %24 = vector.shape_cast %23 : vector<1x32x32xf32> to vector<32x32xf32>
    %c3_20 = arith.constant 3 : index
    %c0_21 = arith.constant 0 : index
    %25 = vector.load %arg2[%c3_20, %c0_21] : memref<6x40xf32, #tpu.memory_space<vmem>>, vector<1x32xf32>
    %cst_22 = arith.constant dense<0.000000e+00> : vector<2x32xf32>
    %26 = tpu.matmul %22, %24, %cst_22 {dimension_numbers = #tpu.dot_dimension_numbers<[1], [0], [0], [1], [0, 0, 1, 1], [], []>} : vector<2x32xf32>, vector<32x32xf32>, vector<2x32xf32> -> vector<2x32xf32>
    %27 = vector.broadcast %25 : vector<1x32xf32> to vector<2x32xf32>
    %28 = arith.addf %26, %27 : vector<2x32xf32>
    %cst_23 = arith.constant 0.000000e+00 : f32
    %29 = vector.broadcast %cst_23 : f32 to vector<2x32xf32>
    %30 = arith.maximumf %28, %29 : vector<2x32xf32>
    %c4 = arith.constant 4 : index
    %c0_24 = arith.constant 0 : index
    %c0_25 = arith.constant 0 : index
    %31 = vector.load %arg1[%c4, %c0_24, %c0_25] : memref<6x32x40xf32, #tpu.memory_space<vmem>>, vector<1x32x32xf32>
    %32 = vector.shape_cast %31 : vector<1x32x32xf32> to vector<32x32xf32>
    %c4_26 = arith.constant 4 : index
    %c0_27 = arith.constant 0 : index
    %33 = vector.load %arg2[%c4_26, %c0_27] : memref<6x40xf32, #tpu.memory_space<vmem>>, vector<1x32xf32>
    %cst_28 = arith.constant dense<0.000000e+00> : vector<2x32xf32>
    %34 = tpu.matmul %30, %32, %cst_28 {dimension_numbers = #tpu.dot_dimension_numbers<[1], [0], [0], [1], [0, 0, 1, 1], [], []>} : vector<2x32xf32>, vector<32x32xf32>, vector<2x32xf32> -> vector<2x32xf32>
    %35 = vector.broadcast %33 : vector<1x32xf32> to vector<2x32xf32>
    %36 = arith.addf %34, %35 : vector<2x32xf32>
    %cst_29 = arith.constant 0.000000e+00 : f32
    %37 = vector.broadcast %cst_29 : f32 to vector<2x32xf32>
    %38 = arith.maximumf %36, %37 : vector<2x32xf32>
    %c5 = arith.constant 5 : index
    %c0_30 = arith.constant 0 : index
    %c0_31 = arith.constant 0 : index
    %39 = vector.load %arg1[%c5, %c0_30, %c0_31] : memref<6x32x40xf32, #tpu.memory_space<vmem>>, vector<1x32x40xf32>
    %40 = vector.shape_cast %39 : vector<1x32x40xf32> to vector<32x40xf32>
    %c5_32 = arith.constant 5 : index
    %c0_33 = arith.constant 0 : index
    %41 = vector.load %arg2[%c5_32, %c0_33] : memref<6x40xf32, #tpu.memory_space<vmem>>, vector<1x40xf32>
    %cst_34 = arith.constant dense<0.000000e+00> : vector<2x40xf32>
    %42 = tpu.matmul %38, %40, %cst_34 {dimension_numbers = #tpu.dot_dimension_numbers<[1], [0], [0], [1], [0, 0, 1, 1], [], []>} : vector<2x32xf32>, vector<32x40xf32>, vector<2x40xf32> -> vector<2x40xf32>
    %43 = vector.broadcast %41 : vector<1x40xf32> to vector<2x40xf32>
    %44 = arith.addf %42, %43 : vector<2x40xf32>
    %c0_35 = arith.constant 0 : index
    %c0_36 = arith.constant 0 : index
    %45 = vector.load %arg3[%c0_35, %c0_36] : memref<2x40xf32, #tpu.memory_space<vmem>>, vector<2x40xf32>
    tpu.vector_store %arg3[%c0_35, %c0_36], %44 {strides = array<i32>} : memref<2x40xf32, #tpu.memory_space<vmem>>, vector<2x40xf32>,
    return
  }
}

</mosaic_0001>

<llo_original>
// kernel: tpu_custom_call.1
$region0: #{tpu_custom_call.1}
  #allocation0 [shape = 'u32[]', space=smem, size = 0x4, offset = 0x4, fixed_abs, tag = 'smem constant byte address 0x4 - core index']
  #allocation1 [shape = 'u32[72,128]{1,0:T(1,128)}', space=vmem, size = 0x9000, scoped, tag = 'internal scratch']
  %s0 = inlined_call_operand.hbm [shape: f32[2,32], index: 0, kind: input, shape index: {}]
  %s1 = inlined_call_operand.hbm [shape: f32[6,32,40], index: 1, kind: input, shape index: {}]
  %s2 = inlined_call_operand.hbm [shape: f32[6,40], index: 2, kind: input, shape index: {}]
  %s3 = inlined_call_operand.hbm [shape: f32[2,40], index: 3, kind: output, shape index: {}]
  %s4 = sld [smem:[#allocation0]]
  $region34: #{tpu_custom_call.1} parent=0
    _
  %s6 = ssub.s32 1, %s4
  %s7 = scalar_select 0, %s6, %s4
  $region1: #{tpu_custom_call.1} parent=0
    #allocation2 [shape = 'u8[1024]{0}', space=vmem, size = 0x400, scoped, tag = 'input window, operand 0, single buffered']
    #allocation3 [shape = 's32[1]{0}', space=sflag, size = 0x4, scoped, tag = 'scoped memory for tpu_custom_call.1']
    #allocation4 [shape = 's32[1]{0}', space=sflag, size = 0x4, scoped, tag = 'scoped memory for tpu_custom_call.1']
    #allocation5 [shape = 'u8[98304]{0}', space=vmem, size = 0x18000, scoped, tag = 'input window, operand 1, single buffered']
    #allocation6 [shape = 's32[1]{0}', space=sflag, size = 0x4, scoped, tag = 'scoped memory for tpu_custom_call.1']
    #allocation7 [shape = 'u8[4096]{0}', space=vmem, size = 0x1000, scoped, tag = 'input window, operand 2, single buffered']
    #allocation8 [shape = 'u8[1024]{0}', space=vmem, size = 0x400, scoped, tag = 'output window, operand 0, single buffered']
    %8 = vsyncpa [#allocation3], 0
    %9 = vsyncpa [#allocation6], 0
    %10 = vsyncpa [#allocation4], 0
    // Predicated region
    $region2: #{tpu_custom_call.1} parent=1 // pred_check
      _
    $region3: #{tpu_custom_call.1} parent=1 // pred_check_branch
      %12 = sbr.rel (0) target = $region5
    $region4: #{tpu_custom_call.1} parent=1 // pred_region
      %14 = vsyncadd [#allocation3], 0
      %s16 = sshll.u32 %s0, 4
      %s17 = int_to_ptr.hbm [resolvable:$true] %s16
      %s18 = sshll.u32 [#allocation2], 4
      %s19 = int_to_ptr.vmem [resolvable:$true] %s18
      %21 = dma.hbm_to_vmem [thread:$0]  %s17, 32, %s19, [#allocation3]
    $region5: #{tpu_custom_call.1} parent=1 // pred_fallthru
      _
    // Predicated region
    $region6: #{tpu_custom_call.1} parent=1 // pred_check
      _
    $region7: #{tpu_custom_call.1} parent=1 // pred_check_branch
      %23 = sbr.rel (0) target = $region9
    $region8: #{tpu_custom_call.1} parent=1 // pred_region
      %25 = vsyncadd [#allocation6], 0
      %s26 = sshll.u32 %s1, 4
      %s27 = int_to_ptr.hbm [resolvable:$true] %s26
      %s28 = sshll.u32 [#allocation5], 4
      %s29 = int_to_ptr.vmem [resolvable:$true] %s28
      %34 = dma.hbm_to_vmem [thread:$0]  %s27, 3072, %s29, [#allocation6], 128, 128, 8
    $region9: #{tpu_custom_call.1} parent=1 // pred_fallthru
      _
    // Predicated region
    $region10: #{tpu_custom_call.1} parent=1 // pred_check
      _
    $region11: #{tpu_custom_call.1} parent=1 // pred_check_branch
      %36 = sbr.rel (0) target = $region13
    $region12: #{tpu_custom_call.1} parent=1 // pred_region
      %38 = vsyncadd [#allocation6], 0
      %s40 = sshll.u32 %s2, 4
      %s41 = int_to_ptr.hbm [resolvable:$true] %s40
      %s42 = sshll.u32 [#allocation7], 4
      %s43 = int_to_ptr.vmem [resolvable:$true] %s42
      %45 = dma.hbm_to_vmem [thread:$0]  %s41, 128, %s43, [#allocation6]
    $region13: #{tpu_custom_call.1} parent=1 // pred_fallthru
      _
    // Predicated region
    $region14: #{tpu_custom_call.1} parent=1 // pred_check
      _
    $region15: #{tpu_custom_call.1} parent=1 // pred_check_branch
      %47 = sbr.rel (0) target = $region17
    $region16: #{tpu_custom_call.1} parent=1 // pred_region
      %49 = dma.done [#allocation3], 32
    $region17: #{tpu_custom_call.1} parent=1 // pred_fallthru
      _
    // Predicated region
    $region18: #{tpu_custom_call.1} parent=1 // pred_check
      _
    $region19: #{tpu_custom_call.1} parent=1 // pred_check_branch
      %51 = sbr.rel (0) target = $region21
    $region20: #{tpu_custom_call.1} parent=1 // pred_region
      %53 = dma.done [#allocation6], 3072
    $region21: #{tpu_custom_call.1} parent=1 // pred_fallthru
      _
    // Predicated region
    $region22: #{tpu_custom_call.1} parent=1 // pred_check
      _
    $region23: #{tpu_custom_call.1} parent=1 // pred_check_branch
      %55 = sbr.rel (0) target = $region25
    $region24: #{tpu_custom_call.1} parent=1 // pred_region
      %57 = dma.done [#allocation6], 128
    $region25: #{tpu_custom_call.1} parent=1 // pred_fallthru
      _
    %v58 = vld [vmem:[#allocation2] sm:$0x3]
    %v59 = vld [vmem:[#allocation5] sm:$0xff]
    %v60 = vld [vmem:[#allocation5 + $0x8] sm:$0xff]
    %v61 = vld [vmem:[#allocation5 + $0x10] sm:$0xff]
    %v62 = vld [vmem:[#allocation5 + $0x18] sm:$0xff]
    %v63 = vld [vmem:[#allocation7] sm:$0x1]
    %v64 = vperm.slane %v63, 0
    %vm65 = vcmask 261120
    %v67 = vsel %vm65, %v58, 0
    %69 = vmatpush.msra.mxu0 0.0
    %70 = vmatpush.msra.mxu0 0.0
    %71 = vmatpush.msra.mxu0 0.0
    %72 = vmatpush.msra.mxu0 0.0
    %73 = vmatpush.msra.mxu0 0.0
    %74 = vmatpush.msra.mxu0 0.0
    %75 = vmatpush.msra.mxu0 0.0
    %76 = vmatpush.msra.mxu0 0.0
    %77 = vmatpush.msra.mxu0 0.0
    %78 = vmatpush.msra.mxu0 0.0
    %79 = vmatpush.msra.mxu0 0.0
    %80 = vmatpush.msra.mxu0 0.0
    %81 = vmatpush.msra.mxu0 %v62
    %82 = vmatpush.msra.mxu0 %v61
    %83 = vmatpush.msra.mxu0 %v60
    %84 = vmatpush.msra.mxu0 %v59
    %85 = vmatmul.f32.gmra.mxu0 %v67
    %v86 = vpop.f32.mrf.mxu0
    %v87 = vadd.f32 %v64, %v86
    %88 = vdwg.mxu0
    %v89 = vmax.f32 %v87, 0.0
    %s90 = scalar_lea.vmem [#allocation5], 32
    %v91 = vld [vmem:[%s90] sm:$0xff]
    %v92 = vld [vmem:[%s90 + $0x8] sm:$0xff]
    %v93 = vld [vmem:[%s90 + $0x10] sm:$0xff]
    %v94 = vld [vmem:[%s90 + $0x18] sm:$0xff]
    %v95 = vld [vmem:[#allocation7 + $0x1] sm:$0x1]
    %v96 = vperm.slane %v95, 0
    %v98 = vsel %vm65, %v89, 0
    %100 = vmatpush.msra.mxu0 0.0
    %101 = vmatpush.msra.mxu0 0.0
    %102 = vmatpush.msra.mxu0 0.0
    %103 = vmatpush.msra.mxu0 0.0
    %104 = vmatpush.msra.mxu0 0.0
    %105 = vmatpush.msra.mxu0 0.0
    %106 = vmatpush.msra.mxu0 0.0
    %107 = vmatpush.msra.mxu0 0.0
    %108 = vmatpush.msra.mxu0 0.0
    %109 = vmatpush.msra.mxu0 0.0
    %110 = vmatpush.msra.mxu0 0.0
    %111 = vmatpush.msra.mxu0 0.0
    %112 = vmatpush.msra.mxu0 %v94
    %113 = vmatpush.msra.mxu0 %v93
    %114 = vmatpush.msra.mxu0 %v92
    %115 = vmatpush.msra.mxu0 %v91
    %116 = vmatmul.f32.gmra.mxu0 %v98
    %v117 = vpop.f32.mrf.mxu0
    %v118 = vadd.f32 %v96, %v117
    %119 = vdwg.mxu0
    %s120 = scalar_lea.vmem [#allocation5], 64
    %v121 = vld [vmem:[%s120] sm:$0xff]
    %v122 = vld [vmem:[%s120 + $0x8] sm:$0xff]
    %v123 = vld [vmem:[%s120 + $0x10] sm:$0xff]
    %v124 = vld [vmem:[%s120 + $0x18] sm:$0xff]
    %v125 = vld [vmem:[#allocation7 + $0x2] sm:$0x1]
    %v126 = vperm.slane %v125, 0
    %v128 = vsel %vm65, %v118, 0
    %130 = vmatpush.msra.mxu0 0.0
    %131 = vmatpush.msra.mxu0 0.0
    %132 = vmatpush.msra.mxu0 0.0
    %133 = vmatpush.msra.mxu0 0.0
    %134 = vmatpush.msra.mxu0 0.0
    %135 = vmatpush.msra.mxu0 0.0
    %136 = vmatpush.msra.mxu0 0.0
    %137 = vmatpush.msra.mxu0 0.0
    %138 = vmatpush.msra.mxu0 0.0
    %139 = vmatpush.msra.mxu0 0.0
    %140 = vmatpush.msra.mxu0 0.0
    %141 = vmatpush.msra.mxu0 0.0
    %142 = vmatpush.msra.mxu0 %v124
    %143 = vmatpush.msra.mxu0 %v123
    %144 = vmatpush.msra.mxu0 %v122
    %145 = vmatpush.msra.mxu0 %v121
    %146 = vmatmul.f32.gmra.mxu0 %v128
    %v147 = vpop.f32.mrf.mxu0
    %v148 = vadd.f32 %v126, %v147
    %149 = vdwg.mxu0
    %v150 = vmax.f32 %v148, 0.0
    %s151 = scalar_lea.vmem [#allocation5], 96
    %v152 = vld [vmem:[%s151] sm:$0xff]
    %v153 = vld [vmem:[%s151 + $0x8] sm:$0xff]
    %v154 = vld [vmem:[%s151 + $0x10] sm:$0xff]
    %v155 = vld [vmem:[%s151 + $0x18] sm:$0xff]
    %v156 = vld [vmem:[#allocation7 + $0x3] sm:$0x1]
    %v157 = vperm.slane %v156, 0
    %v159 = vsel %vm65, %v150, 0
    %161 = vmatpush.msra.mxu0 0.0
    %162 = vmatpush.msra.mxu0 0.0
    %163 = vmatpush.msra.mxu0 0.0
    %164 = vmatpush.msra.mxu0 0.0
    %165 = vmatpush.msra.mxu0 0.0
    %166 = vmatpush.msra.mxu0 0.0
    %167 = vmatpush.msra.mxu0 0.0
    %168 = vmatpush.msra.mxu0 0.0
    %169 = vmatpush.msra.mxu0 0.0
    %170 = vmatpush.msra.mxu0 0.0
    %171 = vmatpush.msra.mxu0 0.0
    %172 = vmatpush.msra.mxu0 0.0
    %173 = vmatpush.msra.mxu0 %v155
    %174 = vmatpush.msra.mxu0 %v154
    %175 = vmatpush.msra.mxu0 %v153
    %176 = vmatpush.msra.mxu0 %v152
    %177 = vmatmul.f32.gmra.mxu0 %v159
    %v178 = vpop.f32.mrf.mxu0
    %v179 = vadd.f32 %v157, %v178
    %180 = vdwg.mxu0
    %v181 = vmax.f32 %v179, 0.0
    %s182 = scalar_lea.vmem [#allocation5], 128
    %v183 = vld [vmem:[%s182] sm:$0xff]
    %v184 = vld [vmem:[%s182 + $0x8] sm:$0xff]
    %v185 = vld [vmem:[%s182 + $0x10] sm:$0xff]
    %v186 = vld [vmem:[%s182 + $0x18] sm:$0xff]
    %v187 = vld [vmem:[#allocation7 + $0x4] sm:$0x1]
    %v188 = vperm.slane %v187, 0
    %v190 = vsel %vm65, %v181, 0
    %192 = vmatpush.msra.mxu0 0.0
    %193 = vmatpush.msra.mxu0 0.0
    %194 = vmatpush.msra.mxu0 0.0
    %195 = vmatpush.msra.mxu0 0.0
    %196 = vmatpush.msra.mxu0 0.0
    %197 = vmatpush.msra.mxu0 0.0
    %198 = vmatpush.msra.mxu0 0.0
    %199 = vmatpush.msra.mxu0 0.0
    %200 = vmatpush.msra.mxu0 0.0
    %201 = vmatpush.msra.mxu0 0.0
    %202 = vmatpush.msra.mxu0 0.0
    %203 = vmatpush.msra.mxu0 0.0
    %204 = vmatpush.msra.mxu0 %v186
    %205 = vmatpush.msra.mxu0 %v185
    %206 = vmatpush.msra.mxu0 %v184
    %207 = vmatpush.msra.mxu0 %v183
    %208 = vmatmul.f32.gmra.mxu0 %v190
    %v209 = vpop.f32.mrf.mxu0
    %v210 = vadd.f32 %v188, %v209
    %211 = vdwg.mxu0
    %v212 = vmax.f32 %v210, 0.0
    %s213 = scalar_lea.vmem [#allocation5], 160
    %v214 = vld [vmem:[%s213] sm:$0xff]
    %v215 = vld [vmem:[%s213 + $0x8] sm:$0xff]
    %v216 = vld [vmem:[%s213 + $0x10] sm:$0xff]
    %v217 = vld [vmem:[%s213 + $0x18] sm:$0xff]
    %v218 = vld [vmem:[#allocation7 + $0x5] sm:$0x1]
    %v219 = vperm.slane %v218, 0
    %v221 = vsel %vm65, %v212, 0
    %223 = vmatpush.msra.mxu0 0.0
    %224 = vmatpush.msra.mxu0 0.0
    %225 = vmatpush.msra.mxu0 0.0
    %226 = vmatpush.msra.mxu0 0.0
    %227 = vmatpush.msra.mxu0 0.0
    %228 = vmatpush.msra.mxu0 0.0
    %229 = vmatpush.msra.mxu0 0.0
    %230 = vmatpush.msra.mxu0 0.0
    %231 = vmatpush.msra.mxu0 0.0
    %232 = vmatpush.msra.mxu0 0.0
    %233 = vmatpush.msra.mxu0 0.0
    %234 = vmatpush.msra.mxu0 0.0
    %235 = vmatpush.msra.mxu0 %v217
    %236 = vmatpush.msra.mxu0 %v216
    %237 = vmatpush.msra.mxu0 %v215
    %238 = vmatpush.msra.mxu0 %v214
    %239 = vmatmul.f32.gmra.mxu0 %v221
    %v240 = vpop.f32.mrf.mxu0
    %v241 = vadd.f32 %v219, %v240
    %242 = vdwg.mxu0
    %vm243 = vcmask 320512
    %244 = vst.msk [vmem:[#allocation8] sm:$0x3] %vm243, %v241
    // Predicated region
    $region26: #{tpu_custom_call.1} parent=1 // pred_check
      _
    $region27: #{tpu_custom_call.1} parent=1 // pred_check_branch
      %246 = sbr.rel (0) target = $region29
    $region28: #{tpu_custom_call.1} parent=1 // pred_region
      %248 = vsyncadd [#allocation4], 0
      %s250 = sshll.u32 [#allocation8], 4
      %s251 = int_to_ptr.vmem [resolvable:$true] %s250
      %s252 = sshll.u32 %s3, 4
      %s253 = int_to_ptr.hbm [resolvable:$true] %s252
      %255 = dma.vmem_to_hbm [thread:$0]  %s251, 32, %s253, [#allocation4]
    $region29: #{tpu_custom_call.1} parent=1 // pred_fallthru
      _
    // Predicated region
    $region30: #{tpu_custom_call.1} parent=1 // pred_check
      _
    $region31: #{tpu_custom_call.1} parent=1 // pred_check_branch
      %257 = sbr.rel (0) target = $region33
    $region32: #{tpu_custom_call.1} parent=1 // pred_region
      %259 = dma.done [#allocation4], 32
    $region33: #{tpu_custom_call.1} parent=1 // pred_fallthru
      _
    %260 = vsyncpa [#allocation3], 1
    %261 = vsyncpa [#allocation6], 1
    %262 = vsyncpa [#allocation4], 1

</llo_original>
